<compile_context>
chip_gen: v6e
topology: v6e:2x2x1
jax: 0.10.0
libtpu: 0.0.40
codegen_flags: <defaults>
</compile_context>

<pallas_src>
import jax
import jax.numpy as jnp
from jax.experimental import pallas as pl
from jax.experimental.pallas import tpu as pltpu


_MIN_BYTES_PER_CHUNK = 1 << 20   # aim for >= 1 MiB per DMA descriptor
_MAX_INFLIGHT_DMAS = 4           # cap on concurrently in-flight descriptors


def _chunk_bounds(leading: int, nbytes: int):
    """Static (start, stop) splits of the leading axis for chunked DMAs."""
    nchunks = max(1, min(_MAX_INFLIGHT_DMAS, leading,
                         nbytes // _MIN_BYTES_PER_CHUNK))
    base, rem = divmod(leading, nchunks)
    bounds, start = [], 0
    for c in range(nchunks):
        stop = start + base + (1 if c < rem else 0)
        bounds.append((start, stop))
        start = stop
    return bounds


def _identity_impl(x: jax.Array) -> jax.Array:
    if x.size == 0:
        return x

    squeeze = x.ndim == 0
    if squeeze:                      # give the DMA at least one axis to slice
        x = x.reshape(1)

    nbytes = int(x.size * jnp.dtype(x.dtype).itemsize)
    bounds = _chunk_bounds(x.shape[0], nbytes)
    nchunks = len(bounds)

    def identity_kernel(x_hbm, o_hbm, sems):
        # Start all HBM->HBM copies (whole array, or static leading-axis
        # chunks), then wait on all of them, so up to `nchunks` DMAs overlap.
        copies = []
        for c, (lo, hi) in enumerate(bounds):
            if nchunks == 1:
                cp = pltpu.make_async_copy(x_hbm, o_hbm, sems.at[c])
            else:
                cp = pltpu.make_async_copy(x_hbm.at[lo:hi], o_hbm.at[lo:hi],
                                           sems.at[c])
            cp.start()
            copies.append(cp)
        for cp in copies:
            cp.wait()

    y = pl.pallas_call(
        identity_kernel,
        out_shape=jax.ShapeDtypeStruct(x.shape, x.dtype),
        in_specs=[pl.BlockSpec(memory_space=pl.ANY)],
        out_specs=pl.BlockSpec(memory_space=pl.ANY),
        scratch_shapes=[pltpu.SemaphoreType.DMA((nchunks,))],
        compiler_params=pltpu.CompilerParams(has_side_effects=True),
        cost_estimate=pl.CostEstimate(
            flops=0, transcendentals=0, bytes_accessed=2 * nbytes),
    )(x)

    return y.reshape(()) if squeeze else y


# NOTE: semantically nn.Identity could simply `return x` (zero HBM traffic);
# the Pallas kernel is kept because the exercise asks for a materialized copy.
identity = jax.jit(_identity_impl)


if __name__ == "__main__":
    key = jax.random.PRNGKey(0)
    x = jax.random.normal(key, (2, 4, 16, 16), dtype=jnp.float32)

    y = identity(x)
    jax.block_until_ready(y)

    assert y.shape == x.shape and y.dtype == x.dtype
    assert bool(jnp.array_equal(y, x))
    print("KERNEL_OK")
</pallas_src>

<mosaic_0001>
module attributes {stable_mosaic.version = 11 : i64} {
  func.func @identity_kernel(%arg0: memref<2x4x16x16xf32, #tpu.memory_space<any>>, %arg1: memref<2x4x16x16xf32, #tpu.memory_space<any>>, %arg2: memref<1x!tpu.dma_semaphore, #tpu.memory_space<semaphore_mem>>) attributes {dimension_semantics = [], scalar_prefetch = 0 : i64, scratch_operands = 1 : i64, tpu.core_type = #tpu.core_type<tc>} {
    %c0_i32 = arith.constant 0 : i32
    %0 = tpu.memref_slice %arg2[%c0_i32] : memref<1x!tpu.dma_semaphore, #tpu.memory_space<semaphore_mem>> -> memref<1x!tpu.dma_semaphore, #tpu.memory_space<semaphore_mem>>
    %1 = tpu.memref_squeeze %0 : memref<1x!tpu.dma_semaphore, #tpu.memory_space<semaphore_mem>> -> memref<!tpu.dma_semaphore, #tpu.memory_space<semaphore_mem>>
    tpu.enqueue_dma source(%arg0 : memref<2x4x16x16xf32, #tpu.memory_space<any>>) target(%arg1 : memref<2x4x16x16xf32, #tpu.memory_space<any>>) target_semaphore(%1 : memref<!tpu.dma_semaphore, #tpu.memory_space<semaphore_mem>>)
    %c0_i32_0 = arith.constant 0 : i32
    %2 = tpu.memref_slice %arg2[%c0_i32_0] : memref<1x!tpu.dma_semaphore, #tpu.memory_space<semaphore_mem>> -> memref<1x!tpu.dma_semaphore, #tpu.memory_space<semaphore_mem>>
    %3 = tpu.memref_squeeze %2 : memref<1x!tpu.dma_semaphore, #tpu.memory_space<semaphore_mem>> -> memref<!tpu.dma_semaphore, #tpu.memory_space<semaphore_mem>>
    tpu.wait_dma2 semaphore(%3 : memref<!tpu.dma_semaphore, #tpu.memory_space<semaphore_mem>>) src(%arg0 : memref<2x4x16x16xf32, #tpu.memory_space<any>>) dst(%arg1 : memref<2x4x16x16xf32, #tpu.memory_space<any>>)
    return
  }
}

</mosaic_0001>

<llo_original>
// kernel: _identity_impl.1
$region0: #{_identity_impl.1}
  #allocation0 [shape = 'u32[]', space=smem, size = 0x4, offset = 0x4, fixed_abs, tag = 'smem constant byte address 0x4 - core index']
  #allocation1 [shape = 'u32[144,128]{1,0:T(1,128)}', space=vmem, size = 0x12000, scoped, tag = 'internal scratch']
  #allocation2 [shape = 's32[1]{0}', space=sflag, size = 0x4, scoped, tag = 'scratch operand']
  #allocation3 [shape = 's32[]', space=sflag, size = 0x4, offset = 0, fixed_abs, tag = 'sflag constant byte address 0x0 - dummy sync flag']
  #allocation4 [shape = 'u32[0]{0}', space=smem, size = 0, offset = 0, fixed_abs, tag = 'smem constant byte address 0x0 - null']
  %s0 = inlined_call_operand.hbm [shape: f32[2,4,16,16], index: 0, kind: input, shape index: {}]
  %s1 = inlined_call_operand.hbm [shape: f32[2,4,16,16], index: 1, kind: output, shape index: {}]
  %s2 = sld [smem:[#allocation0]]
  $region2: #{_identity_impl.1} parent=0
    _
  %s4 = ssub.s32 1, %s2
  %s5 = scalar_select 0, %s4, %s2
  %s7 = sshll.u32 1, 14
  %s8 = sxor.u32 4294967295, %s7
  %12 = dma.general %s0, 2048, %s1, [#allocation2], 131072, [#allocation4], 0, 0
  %s13 = smul.u32 2, 4
  %s14 = smul.u32 %s13, 16
  %s15 = smul.u32 %s14, 1
  %s16 = sshll.u32 %s15, 4
  %17 = dma.done [#allocation2], %s16
  %18 = vsyncmov [#allocation2]
  %s19 = vpop.sfrf %18
  %p20 = scmp.eq.s32.totalorder %s19, 0
  %p21 = pneg %p20
  %23 = shalt.err (%p21)

</llo_original>
